<compile_context>
chip_gen: v5e
topology: v5e:2x2
jax: 0.10.0
libtpu: 0.0.40
codegen_flags: <defaults>
</compile_context>

<pallas_src>
import functools

import jax
import jax.numpy as jnp
from jax.experimental import pallas as pl
from jax.experimental.pallas import tpu as pltpu


def _conv1x1_kernel(w_ref, x_ref, o_ref, *, epilogue=None):
    """One MXU matmul: (Cout, Cin) @ (Cin, HW) with f32 accumulation,
    optional fused pointwise epilogue on the f32 accumulator."""
    acc = jnp.dot(w_ref[...], x_ref[...], preferred_element_type=jnp.float32)
    if epilogue is not None:
        acc = epilogue(acc)  # f32, shape (Cout, HW)
    o_ref[...] = acc.astype(o_ref.dtype)


@functools.partial(jax.jit, static_argnames=("epilogue", "compute_dtype"))
def conv2d_1x1_nchw(x_nchw, weight, *, epilogue=None, compute_dtype=None):
    """1x1 conv, stride 1, no bias.

    x_nchw: (N, Cin, H, W), weight: (Cout, Cin, 1, 1).
    epilogue: optional fn(f32 (Cout, HW)) -> f32 (Cout, HW), fused before store.
    compute_dtype: optionally cast inputs (e.g. jnp.bfloat16) for bandwidth;
                   accumulation stays f32, output keeps x's dtype.
    """
    N, Cin, H, W = x_nchw.shape
    Cout = weight.shape[0]
    HW = H * W
    out_dtype = x_nchw.dtype

    # Free row-major views — no transposes, no materialization.
    w_mat = weight.reshape(Cout, Cin)        # (Cout, Cin)
    x_mat = x_nchw.reshape(N, Cin, HW)       # (N, Cin, HW)

    if compute_dtype is not None:
        w_mat = w_mat.astype(compute_dtype)
        x_mat = x_mat.astype(compute_dtype)

    itemsize = jnp.dtype(x_mat.dtype).itemsize
    cost = pl.CostEstimate(
        flops=2 * N * Cout * Cin * HW,
        bytes_accessed=(Cout * Cin + N * Cin * HW) * itemsize
        + N * Cout * HW * jnp.dtype(out_dtype).itemsize,
        transcendentals=0,
    )
    kernel = functools.partial(_conv1x1_kernel, epilogue=epilogue)

    if N == 1:
        # Gridless: whole arrays live in VMEM, no pipeline machinery.
        out_mat = pl.pallas_call(
            kernel,
            out_shape=jax.ShapeDtypeStruct((Cout, HW), out_dtype),
            in_specs=[
                pl.BlockSpec(memory_space=pltpu.MemorySpace.VMEM),
                pl.BlockSpec(memory_space=pltpu.MemorySpace.VMEM),
            ],
            out_specs=pl.BlockSpec(memory_space=pltpu.MemorySpace.VMEM),
            cost_estimate=cost,
        )(w_mat, x_mat.reshape(Cin, HW))
        return out_mat.reshape(1, Cout, H, W)

    # Batched path: grid over N, weight stays resident, batch dim squeezed so
    # the same 2-D kernel body is reused.  "parallel" lets v7x shard the two
    # TensorCores when N provides enough work to amortize per-step overhead.
    out = pl.pallas_call(
        kernel,
        out_shape=jax.ShapeDtypeStruct((N, Cout, HW), out_dtype),
        grid=(N,),
        in_specs=[
            pl.BlockSpec((Cout, Cin), lambda n: (0, 0)),
            pl.BlockSpec((pl.Squeezed(), Cin, HW), lambda n: (n, 0, 0)),
        ],
        out_specs=pl.BlockSpec((pl.Squeezed(), Cout, HW), lambda n: (n, 0, 0)),
        compiler_params=pltpu.CompilerParams(dimension_semantics=("parallel",)),
        cost_estimate=cost,
    )(w_mat, x_mat)
    return out.reshape(N, Cout, H, W)


if __name__ == "__main__":
    key = jax.random.PRNGKey(0)
    kx, kw = jax.random.split(key)

    # Shapes implied by the module's forward: x160 is (1, 112, 14, 14),
    # conv weight is (672, 112, 1, 1), bias=False.
    x = jax.random.normal(kx, (1, 112, 14, 14), dtype=jnp.float32)
    w = jax.random.normal(kw, (672, 112, 1, 1), dtype=jnp.float32) * 0.05

    y = conv2d_1x1_nchw(x, w)
    y = jax.block_until_ready(y)

    # Reference check against plain-JAX 1x1 conv (einsum over channels).
    y_ref = jnp.einsum("nchw,oc->nohw", x, w.reshape(672, 112))
    assert y.shape == (1, 672, 14, 14), y.shape
    assert jnp.allclose(y, y_ref, atol=1e-4, rtol=1e-4), float(
        jnp.max(jnp.abs(y - y_ref))
    )

    print("KERNEL_OK")
</pallas_src>

<mosaic_0001>
module attributes {stable_mosaic.version = 11 : i64} {
  func.func @_conv1x1_kernel(%arg0: memref<672x112xf32, #tpu.memory_space<vmem>>, %arg1: memref<112x196xf32, #tpu.memory_space<vmem>>, %arg2: memref<672x196xf32, #tpu.memory_space<vmem>>) attributes {dimension_semantics = [], scalar_prefetch = 0 : i64, scratch_operands = 0 : i64, tpu.core_type = #tpu.core_type<tc>} {
    %c0 = arith.constant 0 : index
    %c0_0 = arith.constant 0 : index
    %0 = vector.load %arg0[%c0, %c0_0] : memref<672x112xf32, #tpu.memory_space<vmem>>, vector<672x112xf32>
    %c0_1 = arith.constant 0 : index
    %c0_2 = arith.constant 0 : index
    %1 = vector.load %arg1[%c0_1, %c0_2] : memref<112x196xf32, #tpu.memory_space<vmem>>, vector<112x196xf32>
    %cst = arith.constant dense<0.000000e+00> : vector<672x196xf32>
    %2 = tpu.matmul %0, %1, %cst {dimension_numbers = #tpu.dot_dimension_numbers<[1], [0], [0], [1], [0, 0, 1, 1], [], []>} : vector<672x112xf32>, vector<112x196xf32>, vector<672x196xf32> -> vector<672x196xf32>
    %c0_3 = arith.constant 0 : index
    %c0_4 = arith.constant 0 : index
    %3 = vector.load %arg2[%c0_3, %c0_4] : memref<672x196xf32, #tpu.memory_space<vmem>>, vector<672x196xf32>
    tpu.vector_store %arg2[%c0_3, %c0_4], %2 {strides = array<i32>} : memref<672x196xf32, #tpu.memory_space<vmem>>, vector<672x196xf32>,
    return
  }
}

</mosaic_0001>

<llo_original>
// kernel: conv2d_1x1_nchw.1
$region0: #{conv2d_1x1_nchw.1}
  #allocation0 [shape = 'u32[]', space=smem, size = 0x4, offset = 0x4, fixed_abs, tag = 'smem constant byte address 0x4 - core index']
  #allocation1 [shape = 'u32[72,128]{1,0:T(1,128)}', space=vmem, size = 0x9000, scoped, tag = 'internal scratch']
  %s0 = inlined_call_operand.vmem [shape: f32[672,112], index: 0, kind: input, shape index: {}]
  %s1 = inlined_call_operand.vmem [shape: f32[112,196], index: 1, kind: input, shape index: {}]
  %s2 = inlined_call_operand.vmem [shape: f32[672,196], index: 2, kind: output, shape index: {}]
  %s3 = sld [smem:[#allocation0]]
  $region18: #{conv2d_1x1_nchw.1} parent=0
    _
  %s5 = ssub.s32 1, %s3
  %s6 = scalar_select 0, %s5, %s3
  // Predicated region
  $region2: #{conv2d_1x1_nchw.1} parent=0 // pred_check
    _
  $region3: #{conv2d_1x1_nchw.1} parent=0 // pred_check_branch
    %8 = sbr.rel (0) target = $region5
  $region4: #{conv2d_1x1_nchw.1} parent=0 // pred_region
    _
  $region5: #{conv2d_1x1_nchw.1} parent=0 // pred_fallthru
    _
  // Predicated region
  $region6: #{conv2d_1x1_nchw.1} parent=0 // pred_check
    _
  $region7: #{conv2d_1x1_nchw.1} parent=0 // pred_check_branch
    %10 = sbr.rel (0) target = $region9
  $region8: #{conv2d_1x1_nchw.1} parent=0 // pred_region
    _
  $region9: #{conv2d_1x1_nchw.1} parent=0 // pred_fallthru
    _
  %v11 = vld [vmem:[%s0] sm:$0xff]
  %v12 = vld [vmem:[%s0 + $0x8] sm:$0xff]
  %v13 = vld [vmem:[%s0 + $0x10] sm:$0xff]
  %v14 = vld [vmem:[%s0 + $0x18] sm:$0xff]
  %v15 = vld [vmem:[%s0 + $0x20] sm:$0xff]
  %v16 = vld [vmem:[%s0 + $0x28] sm:$0xff]
  %v17 = vld [vmem:[%s0 + $0x30] sm:$0xff]
  %v18 = vld [vmem:[%s0 + $0x38] sm:$0xff]
  %v19 = vld [vmem:[%s0 + $0x40] sm:$0xff]
  %v20 = vld [vmem:[%s0 + $0x48] sm:$0xff]
  %v21 = vld [vmem:[%s0 + $0x50] sm:$0xff]
  %v22 = vld [vmem:[%s0 + $0x58] sm:$0xff]
  %v23 = vld [vmem:[%s0 + $0x60] sm:$0xff]
  %v24 = vld [vmem:[%s0 + $0x68] sm:$0xff]
  %v25 = vld [vmem:[%s0 + $0x70] sm:$0xff]
  %v26 = vld [vmem:[%s0 + $0x78] sm:$0xff]
  %v27 = vld [vmem:[%s0 + $0x80] sm:$0xff]
  %v28 = vld [vmem:[%s0 + $0x88] sm:$0xff]
  %v29 = vld [vmem:[%s0 + $0x90] sm:$0xff]
  %v30 = vld [vmem:[%s0 + $0x98] sm:$0xff]
  %v31 = vld [vmem:[%s0 + $0xa0] sm:$0xff]
  %v32 = vld [vmem:[%s0 + $0xa8] sm:$0xff]
  %v33 = vld [vmem:[%s0 + $0xb0] sm:$0xff]
  %v34 = vld [vmem:[%s0 + $0xb8] sm:$0xff]
  %v35 = vld [vmem:[%s0 + $0xc0] sm:$0xff]
  %v36 = vld [vmem:[%s0 + $0xc8] sm:$0xff]
  %v37 = vld [vmem:[%s0 + $0xd0] sm:$0xff]
  %v38 = vld [vmem:[%s0 + $0xd8] sm:$0xff]
  %v39 = vld [vmem:[%s0 + $0xe0] sm:$0xff]
  %v40 = vld [vmem:[%s0 + $0xe8] sm:$0xff]
  %v41 = vld [vmem:[%s0 + $0xf0] sm:$0xff]
  %v42 = vld [vmem:[%s0 + $0xf8] sm:$0xff]
  %v43 = vld [vmem:[%s0 + $0x100] sm:$0xff]
  %v44 = vld [vmem:[%s0 + $0x108] sm:$0xff]
  %v45 = vld [vmem:[%s0 + $0x110] sm:$0xff]
  %v46 = vld [vmem:[%s0 + $0x118] sm:$0xff]
  %v47 = vld [vmem:[%s0 + $0x120] sm:$0xff]
  %v48 = vld [vmem:[%s0 + $0x128] sm:$0xff]
  %v49 = vld [vmem:[%s0 + $0x130] sm:$0xff]
  %v50 = vld [vmem:[%s0 + $0x138] sm:$0xff]
  %v51 = vld [vmem:[%s0 + $0x140] sm:$0xff]
  %v52 = vld [vmem:[%s0 + $0x148] sm:$0xff]
  %v53 = vld [vmem:[%s0 + $0x150] sm:$0xff]
  %v54 = vld [vmem:[%s0 + $0x158] sm:$0xff]
  %v55 = vld [vmem:[%s0 + $0x160] sm:$0xff]
  %v56 = vld [vmem:[%s0 + $0x168] sm:$0xff]
  %v57 = vld [vmem:[%s0 + $0x170] sm:$0xff]
  %v58 = vld [vmem:[%s0 + $0x178] sm:$0xff]
  %v59 = vld [vmem:[%s0 + $0x180] sm:$0xff]
  %v60 = vld [vmem:[%s0 + $0x188] sm:$0xff]
  %v61 = vld [vmem:[%s0 + $0x190] sm:$0xff]
  %v62 = vld [vmem:[%s0 + $0x198] sm:$0xff]
  %v63 = vld [vmem:[%s0 + $0x1a0] sm:$0xff]
  %v64 = vld [vmem:[%s0 + $0x1a8] sm:$0xff]
  %v65 = vld [vmem:[%s0 + $0x1b0] sm:$0xff]
  %v66 = vld [vmem:[%s0 + $0x1b8] sm:$0xff]
  %v67 = vld [vmem:[%s0 + $0x1c0] sm:$0xff]
  %v68 = vld [vmem:[%s0 + $0x1c8] sm:$0xff]
  %v69 = vld [vmem:[%s0 + $0x1d0] sm:$0xff]
  %v70 = vld [vmem:[%s0 + $0x1d8] sm:$0xff]
  %v71 = vld [vmem:[%s0 + $0x1e0] sm:$0xff]
  %v72 = vld [vmem:[%s0 + $0x1e8] sm:$0xff]
  %v73 = vld [vmem:[%s0 + $0x1f0] sm:$0xff]
  %v74 = vld [vmem:[%s0 + $0x1f8] sm:$0xff]
  %v75 = vld [vmem:[%s0 + $0x200] sm:$0xff]
  %v76 = vld [vmem:[%s0 + $0x208] sm:$0xff]
  %v77 = vld [vmem:[%s0 + $0x210] sm:$0xff]
  %v78 = vld [vmem:[%s0 + $0x218] sm:$0xff]
  %v79 = vld [vmem:[%s0 + $0x220] sm:$0xff]
  %v80 = vld [vmem:[%s0 + $0x228] sm:$0xff]
  %v81 = vld [vmem:[%s0 + $0x230] sm:$0xff]
  %v82 = vld [vmem:[%s0 + $0x238] sm:$0xff]
  %v83 = vld [vmem:[%s0 + $0x240] sm:$0xff]
  %v84 = vld [vmem:[%s0 + $0x248] sm:$0xff]
  %v85 = vld [vmem:[%s0 + $0x250] sm:$0xff]
  %v86 = vld [vmem:[%s0 + $0x258] sm:$0xff]
  %v87 = vld [vmem:[%s0 + $0x260] sm:$0xff]
  %v88 = vld [vmem:[%s0 + $0x268] sm:$0xff]
  %v89 = vld [vmem:[%s0 + $0x270] sm:$0xff]
  %v90 = vld [vmem:[%s0 + $0x278] sm:$0xff]
  %v91 = vld [vmem:[%s0 + $0x280] sm:$0xff]
  %v92 = vld [vmem:[%s0 + $0x288] sm:$0xff]
  %v93 = vld [vmem:[%s0 + $0x290] sm:$0xff]
  %v94 = vld [vmem:[%s0 + $0x298] sm:$0xff]
  %v95 = vld [vmem:[%s1] sm:$0xff]
  %v96 = vld [vmem:[%s1 + $0x8] sm:$0xff]
  %v97 = vld [vmem:[%s1 + $0x10] sm:$0xff]
  %v98 = vld [vmem:[%s1 + $0x18] sm:$0xff]
  %v99 = vld [vmem:[%s1 + $0x20] sm:$0xff]
  %v100 = vld [vmem:[%s1 + $0x28] sm:$0xff]
  %v101 = vld [vmem:[%s1 + $0x30] sm:$0xff]
  %v102 = vld [vmem:[%s1 + $0x38] sm:$0xff]
  %v103 = vld [vmem:[%s1 + $0x40] sm:$0xff]
  %v104 = vld [vmem:[%s1 + $0x48] sm:$0xff]
  %v105 = vld [vmem:[%s1 + $0x50] sm:$0xff]
  %v106 = vld [vmem:[%s1 + $0x58] sm:$0xff]
  %v107 = vld [vmem:[%s1 + $0x60] sm:$0xff]
  %v108 = vld [vmem:[%s1 + $0x68] sm:$0xff]
  %v109 = vld [vmem:[%s1 + $0x70] sm:$0xff]
  %v110 = vld [vmem:[%s1 + $0x78] sm:$0xff]
  %v111 = vld [vmem:[%s1 + $0x80] sm:$0xff]
  %v112 = vld [vmem:[%s1 + $0x88] sm:$0xff]
  %v113 = vld [vmem:[%s1 + $0x90] sm:$0xff]
  %v114 = vld [vmem:[%s1 + $0x98] sm:$0xff]
  %v115 = vld [vmem:[%s1 + $0xa0] sm:$0xff]
  %v116 = vld [vmem:[%s1 + $0xa8] sm:$0xff]
  %v117 = vld [vmem:[%s1 + $0xb0] sm:$0xff]
  %v118 = vld [vmem:[%s1 + $0xb8] sm:$0xff]
  %v119 = vld [vmem:[%s1 + $0xc0] sm:$0xff]
  %v120 = vld [vmem:[%s1 + $0xc8] sm:$0xff]
  %v121 = vld [vmem:[%s1 + $0xd0] sm:$0xff]
  %v122 = vld [vmem:[%s1 + $0xd8] sm:$0xff]
  %vm123 = vcmask 916480
  %v125 = vsel %vm123, %v11, 0
  %v128 = vsel %vm123, %v12, 0
  %v131 = vsel %vm123, %v13, 0
  %v134 = vsel %vm123, %v14, 0
  %v137 = vsel %vm123, %v15, 0
  %v140 = vsel %vm123, %v16, 0
  %v143 = vsel %vm123, %v17, 0
  %v146 = vsel %vm123, %v18, 0
  %v149 = vsel %vm123, %v19, 0
  %v152 = vsel %vm123, %v20, 0
  %v155 = vsel %vm123, %v21, 0
  %v158 = vsel %vm123, %v22, 0
  %v161 = vsel %vm123, %v23, 0
  %v164 = vsel %vm123, %v24, 0
  %v167 = vsel %vm123, %v25, 0
  %v170 = vsel %vm123, %v26, 0
  %v173 = vsel %vm123, %v27, 0
  %v176 = vsel %vm123, %v28, 0
  %v179 = vsel %vm123, %v29, 0
  %v182 = vsel %vm123, %v30, 0
  %v185 = vsel %vm123, %v31, 0
  %v188 = vsel %vm123, %v32, 0
  %v191 = vsel %vm123, %v33, 0
  %v194 = vsel %vm123, %v34, 0
  %v197 = vsel %vm123, %v35, 0
  %v200 = vsel %vm123, %v36, 0
  %v203 = vsel %vm123, %v37, 0
  %v206 = vsel %vm123, %v38, 0
  %v209 = vsel %vm123, %v39, 0
  %v212 = vsel %vm123, %v40, 0
  %v215 = vsel %vm123, %v41, 0
  %v218 = vsel %vm123, %v42, 0
  %v221 = vsel %vm123, %v43, 0
  %v224 = vsel %vm123, %v44, 0
  %v227 = vsel %vm123, %v45, 0
  %v230 = vsel %vm123, %v46, 0
  %v233 = vsel %vm123, %v47, 0
  %v236 = vsel %vm123, %v48, 0
  %v239 = vsel %vm123, %v49, 0
  %v242 = vsel %vm123, %v50, 0
  %v245 = vsel %vm123, %v51, 0
  %v248 = vsel %vm123, %v52, 0
  %v251 = vsel %vm123, %v53, 0
  %v254 = vsel %vm123, %v54, 0
  %v257 = vsel %vm123, %v55, 0
  %v260 = vsel %vm123, %v56, 0
  %v263 = vsel %vm123, %v57, 0
  %v266 = vsel %vm123, %v58, 0
  %v269 = vsel %vm123, %v59, 0
  %v272 = vsel %vm123, %v60, 0
  %v275 = vsel %vm123, %v61, 0
  %v278 = vsel %vm123, %v62, 0
  %v281 = vsel %vm123, %v63, 0
  %v284 = vsel %vm123, %v64, 0
  %v287 = vsel %vm123, %v65, 0
  %v290 = vsel %vm123, %v66, 0
  %v293 = vsel %vm123, %v67, 0
  %v296 = vsel %vm123, %v68, 0
  %v299 = vsel %vm123, %v69, 0
  %v302 = vsel %vm123, %v70, 0
  %v305 = vsel %vm123, %v71, 0
  %v308 = vsel %vm123, %v72, 0
  %v311 = vsel %vm123, %v73, 0
  %v314 = vsel %vm123, %v74, 0
  %v317 = vsel %vm123, %v75, 0
  %v320 = vsel %vm123, %v76, 0
  %v323 = vsel %vm123, %v77, 0
  %v326 = vsel %vm123, %v78, 0
  %v329 = vsel %vm123, %v79, 0
  %v332 = vsel %vm123, %v80, 0
  %v335 = vsel %vm123, %v81, 0
  %v338 = vsel %vm123, %v82, 0
  %v341 = vsel %vm123, %v83, 0
  %v344 = vsel %vm123, %v84, 0
  %v347 = vsel %vm123, %v85, 0
  %v350 = vsel %vm123, %v86, 0
  %v353 = vsel %vm123, %v87, 0
  %v356 = vsel %vm123, %v88, 0
  %v359 = vsel %vm123, %v89, 0
  %v362 = vsel %vm123, %v90, 0
  %v365 = vsel %vm123, %v91, 0
  %v368 = vsel %vm123, %v92, 0
  %v371 = vsel %vm123, %v93, 0
  %v374 = vsel %vm123, %v94, 0
  %376 = vmatpush.msra.mxu0 0.0
  %377 = vmatpush.msra.mxu0 0.0
  %378 = vmatpush.msra.mxu0 %v121
  %379 = vmatpush.msra.mxu0 %v119
  %380 = vmatpush.msra.mxu0 %v117
  %381 = vmatpush.msra.mxu0 %v115
  %382 = vmatpush.msra.mxu0 %v113
  %383 = vmatpush.msra.mxu0 %v111
  %384 = vmatpush.msra.mxu0 %v109
  %385 = vmatpush.msra.mxu0 %v107
  %386 = vmatpush.msra.mxu0 %v105
  %387 = vmatpush.msra.mxu0 %v103
  %388 = vmatpush.msra.mxu0 %v101
  %389 = vmatpush.msra.mxu0 %v99
  %390 = vmatpush.msra.mxu0 %v97
  %391 = vmatpush.msra.mxu0 %v95
  %392 = vmatmul.f32.gmra.mxu0 %v125
  %v393 = vpop.f32.mrf.mxu0
  %v394 = vadd.f32 0.0, %v393
  %395 = vmatmul.f32.gmra.mxu0 %v128
  %v396 = vpop.f32.mrf.mxu0
  %v397 = vadd.f32 0.0, %v396
  %398 = vmatmul.f32.gmra.mxu0 %v131
  %v399 = vpop.f32.mrf.mxu0
  %v400 = vadd.f32 0.0, %v399
  %401 = vmatmul.f32.gmra.mxu0 %v134
  %v402 = vpop.f32.mrf.mxu0
  %v403 = vadd.f32 0.0, %v402
  %404 = vmatmul.f32.gmra.mxu0 %v137
  %v405 = vpop.f32.mrf.mxu0
  %v406 = vadd.f32 0.0, %v405
  %407 = vmatmul.f32.gmra.mxu0 %v140
  %v408 = vpop.f32.mrf.mxu0
  %v409 = vadd.f32 0.0, %v408
  %410 = vmatmul.f32.gmra.mxu0 %v143
  %v411 = vpop.f32.mrf.mxu0
  %v412 = vadd.f32 0.0, %v411
  %413 = vmatmul.f32.gmra.mxu0 %v146
  %v414 = vpop.f32.mrf.mxu0
  %v415 = vadd.f32 0.0, %v414
  %416 = vmatmul.f32.gmra.mxu0 %v149
  %v417 = vpop.f32.mrf.mxu0
  %v418 = vadd.f32 0.0, %v417
  %419 = vmatmul.f32.gmra.mxu0 %v152
  %v420 = vpop.f32.mrf.mxu0
  %v421 = vadd.f32 0.0, %v420
  %422 = vmatmul.f32.gmra.mxu0 %v155
  %v423 = vpop.f32.mrf.mxu0
  %v424 = vadd.f32 0.0, %v423
  %425 = vmatmul.f32.gmra.mxu0 %v158
  %v426 = vpop.f32.mrf.mxu0
  %v427 = vadd.f32 0.0, %v426
  %428 = vmatmul.f32.gmra.mxu0 %v161
  %v429 = vpop.f32.mrf.mxu0
  %v430 = vadd.f32 0.0, %v429
  %431 = vmatmul.f32.gmra.mxu0 %v164
  %v432 = vpop.f32.mrf.mxu0
  %v433 = vadd.f32 0.0, %v432
  %434 = vmatmul.f32.gmra.mxu0 %v167
  %v435 = vpop.f32.mrf.mxu0
  %v436 = vadd.f32 0.0, %v435
  %437 = vmatmul.f32.gmra.mxu0 %v170
  %v438 = vpop.f32.mrf.mxu0
  %v439 = vadd.f32 0.0, %v438
  %440 = vmatmul.f32.gmra.mxu0 %v173
  %v441 = vpop.f32.mrf.mxu0
  %v442 = vadd.f32 0.0, %v441
  %443 = vmatmul.f32.gmra.mxu0 %v176
  %v444 = vpop.f32.mrf.mxu0
  %v445 = vadd.f32 0.0, %v444
  %446 = vmatmul.f32.gmra.mxu0 %v179
  %v447 = vpop.f32.mrf.mxu0
  %v448 = vadd.f32 0.0, %v447
  %449 = vmatmul.f32.gmra.mxu0 %v182
  %v450 = vpop.f32.mrf.mxu0
  %v451 = vadd.f32 0.0, %v450
  %452 = vmatmul.f32.gmra.mxu0 %v185
  %v453 = vpop.f32.mrf.mxu0
  %v454 = vadd.f32 0.0, %v453
  %455 = vmatmul.f32.gmra.mxu0 %v188
  %v456 = vpop.f32.mrf.mxu0
  %v457 = vadd.f32 0.0, %v456
  %458 = vmatmul.f32.gmra.mxu0 %v191
  %v459 = vpop.f32.mrf.mxu0
  %v460 = vadd.f32 0.0, %v459
  %461 = vmatmul.f32.gmra.mxu0 %v194
  %v462 = vpop.f32.mrf.mxu0
  %v463 = vadd.f32 0.0, %v462
  %464 = vmatmul.f32.gmra.mxu0 %v197
  %v465 = vpop.f32.mrf.mxu0
  %v466 = vadd.f32 0.0, %v465
  %467 = vmatmul.f32.gmra.mxu0 %v200
  %v468 = vpop.f32.mrf.mxu0
  %v469 = vadd.f32 0.0, %v468
  %470 = vmatmul.f32.gmra.mxu0 %v203
  %v471 = vpop.f32.mrf.mxu0
  %v472 = vadd.f32 0.0, %v471
  %473 = vmatmul.f32.gmra.mxu0 %v206
  %v474 = vpop.f32.mrf.mxu0
  %v475 = vadd.f32 0.0, %v474
  %476 = vmatmul.f32.gmra.mxu0 %v209
  %v477 = vpop.f32.mrf.mxu0
  %v478 = vadd.f32 0.0, %v477
  %479 = vmatmul.f32.gmra.mxu0 %v212
  %v480 = vpop.f32.mrf.mxu0
  %v481 = vadd.f32 0.0, %v480
  %482 = vmatmul.f32.gmra.mxu0 %v215
  %v483 = vpop.f32.mrf.mxu0
  %v484 = vadd.f32 0.0, %v483
  %485 = vmatmul.f32.gmra.mxu0 %v218
  %v486 = vpop.f32.mrf.mxu0
  %v487 = vadd.f32 0.0, %v486
  %488 = vmatmul.f32.gmra.mxu0 %v221
  %v489 = vpop.f32.mrf.mxu0
  %v490 = vadd.f32 0.0, %v489
  %491 = vmatmul.f32.gmra.mxu0 %v224
  %v492 = vpop.f32.mrf.mxu0
  %v493 = vadd.f32 0.0, %v492
  %494 = vmatmul.f32.gmra.mxu0 %v227
  %v495 = vpop.f32.mrf.mxu0
  %v496 = vadd.f32 0.0, %v495
  %497 = vmatmul.f32.gmra.mxu0 %v230
  %v498 = vpop.f32.mrf.mxu0
  %v499 = vadd.f32 0.0, %v498
  %500 = vmatmul.f32.gmra.mxu0 %v233
  %v501 = vpop.f32.mrf.mxu0
  %v502 = vadd.f32 0.0, %v501
  %503 = vmatmul.f32.gmra.mxu0 %v236
  %v504 = vpop.f32.mrf.mxu0
  %v505 = vadd.f32 0.0, %v504
  %506 = vmatmul.f32.gmra.mxu0 %v239
  %v507 = vpop.f32.mrf.mxu0
  %v508 = vadd.f32 0.0, %v507
  %509 = vmatmul.f32.gmra.mxu0 %v242
  %v510 = vpop.f32.mrf.mxu0
  %v511 = vadd.f32 0.0, %v510
  %512 = vmatmul.f32.gmra.mxu0 %v245
  %v513 = vpop.f32.mrf.mxu0
  %v514 = vadd.f32 0.0, %v513
  %515 = vmatmul.f32.gmra.mxu0 %v248
  %v516 = vpop.f32.mrf.mxu0
  %v517 = vadd.f32 0.0, %v516
  %518 = vmatmul.f32.gmra.mxu0 %v251
  %v519 = vpop.f32.mrf.mxu0
  %v520 = vadd.f32 0.0, %v519
  %521 = vmatmul.f32.gmra.mxu0 %v254
  %v522 = vpop.f32.mrf.mxu0
  %v523 = vadd.f32 0.0, %v522
  %524 = vmatmul.f32.gmra.mxu0 %v257
  %v525 = vpop.f32.mrf.mxu0
  %v526 = vadd.f32 0.0, %v525
  %527 = vmatmul.f32.gmra.mxu0 %v260
  %v528 = vpop.f32.mrf.mxu0
  %v529 = vadd.f32 0.0, %v528
  %530 = vmatmul.f32.gmra.mxu0 %v263
  %v531 = vpop.f32.mrf.mxu0
  %v532 = vadd.f32 0.0, %v531
  %533 = vmatmul.f32.gmra.mxu0 %v266
  %v534 = vpop.f32.mrf.mxu0
  %v535 = vadd.f32 0.0, %v534
  %536 = vmatmul.f32.gmra.mxu0 %v269
  %v537 = vpop.f32.mrf.mxu0
  %v538 = vadd.f32 0.0, %v537
  %539 = vmatmul.f32.gmra.mxu0 %v272
  %v540 = vpop.f32.mrf.mxu0
  %v541 = vadd.f32 0.0, %v540
  %542 = vmatmul.f32.gmra.mxu0 %v275
  %v543 = vpop.f32.mrf.mxu0
  %v544 = vadd.f32 0.0, %v543
  %545 = vmatmul.f32.gmra.mxu0 %v278
  %v546 = vpop.f32.mrf.mxu0
  %v547 = vadd.f32 0.0, %v546
  %548 = vmatmul.f32.gmra.mxu0 %v281
  %v549 = vpop.f32.mrf.mxu0
  %v550 = vadd.f32 0.0, %v549
  %551 = vmatmul.f32.gmra.mxu0 %v284
  %v552 = vpop.f32.mrf.mxu0
  %v553 = vadd.f32 0.0, %v552
  %554 = vmatmul.f32.gmra.mxu0 %v287
  %v555 = vpop.f32.mrf.mxu0
  %v556 = vadd.f32 0.0, %v555
  %557 = vmatmul.f32.gmra.mxu0 %v290
  %v558 = vpop.f32.mrf.mxu0
  %v559 = vadd.f32 0.0, %v558
  %560 = vmatmul.f32.gmra.mxu0 %v293
  %v561 = vpop.f32.mrf.mxu0
  %v562 = vadd.f32 0.0, %v561
  %563 = vmatmul.f32.gmra.mxu0 %v296
  %v564 = vpop.f32.mrf.mxu0
  %v565 = vadd.f32 0.0, %v564
  %566 = vmatmul.f32.gmra.mxu0 %v299
  %v567 = vpop.f32.mrf.mxu0
  %v568 = vadd.f32 0.0, %v567
  %569 = vmatmul.f32.gmra.mxu0 %v302
  %v570 = vpop.f32.mrf.mxu0
  %v571 = vadd.f32 0.0, %v570
  %572 = vmatmul.f32.gmra.mxu0 %v305
  %v573 = vpop.f32.mrf.mxu0
  %v574 = vadd.f32 0.0, %v573
  %575 = vmatmul.f32.gmra.mxu0 %v308
  %v576 = vpop.f32.mrf.mxu0
  %v577 = vadd.f32 0.0, %v576
  %578 = vmatmul.f32.gmra.mxu0 %v311
  %v579 = vpop.f32.mrf.mxu0
  %v580 = vadd.f32 0.0, %v579
  %581 = vmatmul.f32.gmra.mxu0 %v314
  %v582 = vpop.f32.mrf.mxu0
  %v583 = vadd.f32 0.0, %v582
  %584 = vmatmul.f32.gmra.mxu0 %v317
  %v585 = vpop.f32.mrf.mxu0
  %v586 = vadd.f32 0.0, %v585
  %587 = vmatmul.f32.gmra.mxu0 %v320
  %v588 = vpop.f32.mrf.mxu0
  %v589 = vadd.f32 0.0, %v588
  %590 = vmatmul.f32.gmra.mxu0 %v323
  %v591 = vpop.f32.mrf.mxu0
  %v592 = vadd.f32 0.0, %v591
  %593 = vmatmul.f32.gmra.mxu0 %v326
  %v594 = vpop.f32.mrf.mxu0
  %v595 = vadd.f32 0.0, %v594
  %596 = vmatmul.f32.gmra.mxu0 %v329
  %v597 = vpop.f32.mrf.mxu0
  %v598 = vadd.f32 0.0, %v597
  %599 = vmatmul.f32.gmra.mxu0 %v332
  %v600 = vpop.f32.mrf.mxu0
  %v601 = vadd.f32 0.0, %v600
  %602 = vmatmul.f32.gmra.mxu0 %v335
  %v603 = vpop.f32.mrf.mxu0
  %v604 = vadd.f32 0.0, %v603
  %605 = vmatmul.f32.gmra.mxu0 %v338
  %v606 = vpop.f32.mrf.mxu0
  %v607 = vadd.f32 0.0, %v606
  %608 = vmatmul.f32.gmra.mxu0 %v341
  %v609 = vpop.f32.mrf.mxu0
  %v610 = vadd.f32 0.0, %v609
  %611 = vmatmul.f32.gmra.mxu0 %v344
  %v612 = vpop.f32.mrf.mxu0
  %v613 = vadd.f32 0.0, %v612
  %614 = vmatmul.f32.gmra.mxu0 %v347
  %v615 = vpop.f32.mrf.mxu0
  %v616 = vadd.f32 0.0, %v615
  %617 = vmatmul.f32.gmra.mxu0 %v350
  %v618 = vpop.f32.mrf.mxu0
  %v619 = vadd.f32 0.0, %v618
  %620 = vmatmul.f32.gmra.mxu0 %v353
  %v621 = vpop.f32.mrf.mxu0
  %v622 = vadd.f32 0.0, %v621
  %623 = vmatmul.f32.gmra.mxu0 %v356
  %v624 = vpop.f32.mrf.mxu0
  %v625 = vadd.f32 0.0, %v624
  %626 = vmatmul.f32.gmra.mxu0 %v359
  %v627 = vpop.f32.mrf.mxu0
  %v628 = vadd.f32 0.0, %v627
  %629 = vmatmul.f32.gmra.mxu0 %v362
  %v630 = vpop.f32.mrf.mxu0
  %v631 = vadd.f32 0.0, %v630
  %632 = vmatmul.f32.gmra.mxu0 %v365
  %v633 = vpop.f32.mrf.mxu0
  %v634 = vadd.f32 0.0, %v633
  %635 = vmatmul.f32.gmra.mxu0 %v368
  %v636 = vpop.f32.mrf.mxu0
  %v637 = vadd.f32 0.0, %v636
  %638 = vmatmul.f32.gmra.mxu0 %v371
  %v639 = vpop.f32.mrf.mxu0
  %v640 = vadd.f32 0.0, %v639
  %641 = vmatmul.f32.gmra.mxu0 %v374
  %v642 = vpop.f32.mrf.mxu0
  %v643 = vadd.f32 0.0, %v642
  %644 = vdwg.mxu0
  %645 = vmatpush.msra.mxu0 0.0
  %646 = vmatpush.msra.mxu0 0.0
  %647 = vmatpush.msra.mxu0 %v122
  %648 = vmatpush.msra.mxu0 %v120
  %649 = vmatpush.msra.mxu0 %v118
  %650 = vmatpush.msra.mxu0 %v116
  %651 = vmatpush.msra.mxu0 %v114
  %652 = vmatpush.msra.mxu0 %v112
  %653 = vmatpush.msra.mxu0 %v110
  %654 = vmatpush.msra.mxu0 %v108
  %655 = vmatpush.msra.mxu0 %v106
  %656 = vmatpush.msra.mxu0 %v104
  %657 = vmatpush.msra.mxu0 %v102
  %658 = vmatpush.msra.mxu0 %v100
  %659 = vmatpush.msra.mxu0 %v98
  %660 = vmatpush.msra.mxu0 %v96
  %661 = vmatmul.f32.gmra.mxu0 %v125
  %v662 = vpop.f32.mrf.mxu0
  %v663 = vadd.f32 0.0, %v662
  %664 = vmatmul.f32.gmra.mxu0 %v128
  %v665 = vpop.f32.mrf.mxu0
  %v666 = vadd.f32 0.0, %v665
  %667 = vmatmul.f32.gmra.mxu0 %v131
  %v668 = vpop.f32.mrf.mxu0
  %v669 = vadd.f32 0.0, %v668
  %670 = vmatmul.f32.gmra.mxu0 %v134
  %v671 = vpop.f32.mrf.mxu0
  %v672 = vadd.f32 0.0, %v671
  %673 = vmatmul.f32.gmra.mxu0 %v137
  %v674 = vpop.f32.mrf.mxu0
  %v675 = vadd.f32 0.0, %v674
  %676 = vmatmul.f32.gmra.mxu0 %v140
  %v677 = vpop.f32.mrf.mxu0
  %v678 = vadd.f32 0.0, %v677
  %679 = vmatmul.f32.gmra.mxu0 %v143
  %v680 = vpop.f32.mrf.mxu0
  %v681 = vadd.f32 0.0, %v680
  %682 = vmatmul.f32.gmra.mxu0 %v146
  %v683 = vpop.f32.mrf.mxu0
  %v684 = vadd.f32 0.0, %v683
  %685 = vmatmul.f32.gmra.mxu0 %v149
  %v686 = vpop.f32.mrf.mxu0
  %v687 = vadd.f32 0.0, %v686
  %688 = vmatmul.f32.gmra.mxu0 %v152
  %v689 = vpop.f32.mrf.mxu0
  %v690 = vadd.f32 0.0, %v689
  %691 = vmatmul.f32.gmra.mxu0 %v155
  %v692 = vpop.f32.mrf.mxu0
  %v693 = vadd.f32 0.0, %v692
  %694 = vmatmul.f32.gmra.mxu0 %v158
  %v695 = vpop.f32.mrf.mxu0
  %v696 = vadd.f32 0.0, %v695
  %697 = vmatmul.f32.gmra.mxu0 %v161
  %v698 = vpop.f32.mrf.mxu0
  %v699 = vadd.f32 0.0, %v698
  %700 = vmatmul.f32.gmra.mxu0 %v164
  %v701 = vpop.f32.mrf.mxu0
  %v702 = vadd.f32 0.0, %v701
  %703 = vmatmul.f32.gmra.mxu0 %v167
  %v704 = vpop.f32.mrf.mxu0
  %v705 = vadd.f32 0.0, %v704
  %706 = vmatmul.f32.gmra.mxu0 %v170
  %v707 = vpop.f32.mrf.mxu0
  %v708 = vadd.f32 0.0, %v707
  %709 = vmatmul.f32.gmra.mxu0 %v173
  %v710 = vpop.f32.mrf.mxu0
  %v711 = vadd.f32 0.0, %v710
  %712 = vmatmul.f32.gmra.mxu0 %v176
  %v713 = vpop.f32.mrf.mxu0
  %v714 = vadd.f32 0.0, %v713
  %715 = vmatmul.f32.gmra.mxu0 %v179
  %v716 = vpop.f32.mrf.mxu0
  %v717 = vadd.f32 0.0, %v716
  %718 = vmatmul.f32.gmra.mxu0 %v182
  %v719 = vpop.f32.mrf.mxu0
  %v720 = vadd.f32 0.0, %v719
  %721 = vmatmul.f32.gmra.mxu0 %v185
  %v722 = vpop.f32.mrf.mxu0
  %v723 = vadd.f32 0.0, %v722
  %724 = vmatmul.f32.gmra.mxu0 %v188
  %v725 = vpop.f32.mrf.mxu0
  %v726 = vadd.f32 0.0, %v725
  %727 = vmatmul.f32.gmra.mxu0 %v191
  %v728 = vpop.f32.mrf.mxu0
  %v729 = vadd.f32 0.0, %v728
  %730 = vmatmul.f32.gmra.mxu0 %v194
  %v731 = vpop.f32.mrf.mxu0
  %v732 = vadd.f32 0.0, %v731
  %733 = vmatmul.f32.gmra.mxu0 %v197
  %v734 = vpop.f32.mrf.mxu0
  %v735 = vadd.f32 0.0, %v734
  %736 = vmatmul.f32.gmra.mxu0 %v200
  %v737 = vpop.f32.mrf.mxu0
  %v738 = vadd.f32 0.0, %v737
  %739 = vmatmul.f32.gmra.mxu0 %v203
  %v740 = vpop.f32.mrf.mxu0
  %v741 = vadd.f32 0.0, %v740
  %742 = vmatmul.f32.gmra.mxu0 %v206
  %v743 = vpop.f32.mrf.mxu0
  %v744 = vadd.f32 0.0, %v743
  %745 = vmatmul.f32.gmra.mxu0 %v209
  %v746 = vpop.f32.mrf.mxu0
  %v747 = vadd.f32 0.0, %v746
  %748 = vmatmul.f32.gmra.mxu0 %v212
  %v749 = vpop.f32.mrf.mxu0
  %v750 = vadd.f32 0.0, %v749
  %751 = vmatmul.f32.gmra.mxu0 %v215
  %v752 = vpop.f32.mrf.mxu0
  %v753 = vadd.f32 0.0, %v752
  %754 = vmatmul.f32.gmra.mxu0 %v218
  %v755 = vpop.f32.mrf.mxu0
  %v756 = vadd.f32 0.0, %v755
  %757 = vmatmul.f32.gmra.mxu0 %v221
  %v758 = vpop.f32.mrf.mxu0
  %v759 = vadd.f32 0.0, %v758
  %760 = vmatmul.f32.gmra.mxu0 %v224
  %v761 = vpop.f32.mrf.mxu0
  %v762 = vadd.f32 0.0, %v761
  %763 = vmatmul.f32.gmra.mxu0 %v227
  %v764 = vpop.f32.mrf.mxu0
  %v765 = vadd.f32 0.0, %v764
  %766 = vmatmul.f32.gmra.mxu0 %v230
  %v767 = vpop.f32.mrf.mxu0
  %v768 = vadd.f32 0.0, %v767
  %769 = vmatmul.f32.gmra.mxu0 %v233
  %v770 = vpop.f32.mrf.mxu0
  %v771 = vadd.f32 0.0, %v770
  %772 = vmatmul.f32.gmra.mxu0 %v236
  %v773 = vpop.f32.mrf.mxu0
  %v774 = vadd.f32 0.0, %v773
  %775 = vmatmul.f32.gmra.mxu0 %v239
  %v776 = vpop.f32.mrf.mxu0
  %v777 = vadd.f32 0.0, %v776
  %778 = vmatmul.f32.gmra.mxu0 %v242
  %v779 = vpop.f32.mrf.mxu0
  %v780 = vadd.f32 0.0, %v779
  %781 = vmatmul.f32.gmra.mxu0 %v245
  %v782 = vpop.f32.mrf.mxu0
  %v783 = vadd.f32 0.0, %v782
  %784 = vmatmul.f32.gmra.mxu0 %v248
  %v785 = vpop.f32.mrf.mxu0
  %v786 = vadd.f32 0.0, %v785
  %787 = vmatmul.f32.gmra.mxu0 %v251
  %v788 = vpop.f32.mrf.mxu0
  %v789 = vadd.f32 0.0, %v788
  %790 = vmatmul.f32.gmra.mxu0 %v254
  %v791 = vpop.f32.mrf.mxu0
  %v792 = vadd.f32 0.0, %v791
  %793 = vmatmul.f32.gmra.mxu0 %v257
  %v794 = vpop.f32.mrf.mxu0
  %v795 = vadd.f32 0.0, %v794
  %796 = vmatmul.f32.gmra.mxu0 %v260
  %v797 = vpop.f32.mrf.mxu0
  %v798 = vadd.f32 0.0, %v797
  %799 = vmatmul.f32.gmra.mxu0 %v263
  %v800 = vpop.f32.mrf.mxu0
  %v801 = vadd.f32 0.0, %v800
  %802 = vmatmul.f32.gmra.mxu0 %v266
  %v803 = vpop.f32.mrf.mxu0
  %v804 = vadd.f32 0.0, %v803
  %805 = vmatmul.f32.gmra.mxu0 %v269
  %v806 = vpop.f32.mrf.mxu0
  %v807 = vadd.f32 0.0, %v806
  %808 = vmatmul.f32.gmra.mxu0 %v272
  %v809 = vpop.f32.mrf.mxu0
  %v810 = vadd.f32 0.0, %v809
  %811 = vmatmul.f32.gmra.mxu0 %v275
  %v812 = vpop.f32.mrf.mxu0
  %v813 = vadd.f32 0.0, %v812
  %814 = vmatmul.f32.gmra.mxu0 %v278
  %v815 = vpop.f32.mrf.mxu0
  %v816 = vadd.f32 0.0, %v815
  %817 = vmatmul.f32.gmra.mxu0 %v281
  %v818 = vpop.f32.mrf.mxu0
  %v819 = vadd.f32 0.0, %v818
  %820 = vmatmul.f32.gmra.mxu0 %v284
  %v821 = vpop.f32.mrf.mxu0
  %v822 = vadd.f32 0.0, %v821
  %823 = vmatmul.f32.gmra.mxu0 %v287
  %v824 = vpop.f32.mrf.mxu0
  %v825 = vadd.f32 0.0, %v824
  %826 = vmatmul.f32.gmra.mxu0 %v290
  %v827 = vpop.f32.mrf.mxu0
  %v828 = vadd.f32 0.0, %v827
  %829 = vmatmul.f32.gmra.mxu0 %v293
  %v830 = vpop.f32.mrf.mxu0
  %v831 = vadd.f32 0.0, %v830
  %832 = vmatmul.f32.gmra.mxu0 %v296
  %v833 = vpop.f32.mrf.mxu0
  %v834 = vadd.f32 0.0, %v833
  %835 = vmatmul.f32.gmra.mxu0 %v299
  %v836 = vpop.f32.mrf.mxu0
  %v837 = vadd.f32 0.0, %v836
  %838 = vmatmul.f32.gmra.mxu0 %v302
  %v839 = vpop.f32.mrf.mxu0
  %v840 = vadd.f32 0.0, %v839
  %841 = vmatmul.f32.gmra.mxu0 %v305
  %v842 = vpop.f32.mrf.mxu0
  %v843 = vadd.f32 0.0, %v842
  %844 = vmatmul.f32.gmra.mxu0 %v308
  %v845 = vpop.f32.mrf.mxu0
  %v846 = vadd.f32 0.0, %v845
  %847 = vmatmul.f32.gmra.mxu0 %v311
  %v848 = vpop.f32.mrf.mxu0
  %v849 = vadd.f32 0.0, %v848
  %850 = vmatmul.f32.gmra.mxu0 %v314
  %v851 = vpop.f32.mrf.mxu0
  %v852 = vadd.f32 0.0, %v851
  %853 = vmatmul.f32.gmra.mxu0 %v317
  %v854 = vpop.f32.mrf.mxu0
  %v855 = vadd.f32 0.0, %v854
  %856 = vmatmul.f32.gmra.mxu0 %v320
  %v857 = vpop.f32.mrf.mxu0
  %v858 = vadd.f32 0.0, %v857
  %859 = vmatmul.f32.gmra.mxu0 %v323
  %v860 = vpop.f32.mrf.mxu0
  %v861 = vadd.f32 0.0, %v860
  %862 = vmatmul.f32.gmra.mxu0 %v326
  %v863 = vpop.f32.mrf.mxu0
  %v864 = vadd.f32 0.0, %v863
  %865 = vmatmul.f32.gmra.mxu0 %v329
  %v866 = vpop.f32.mrf.mxu0
  %v867 = vadd.f32 0.0, %v866
  %868 = vmatmul.f32.gmra.mxu0 %v332
  %v869 = vpop.f32.mrf.mxu0
  %v870 = vadd.f32 0.0, %v869
  %871 = vmatmul.f32.gmra.mxu0 %v335
  %v872 = vpop.f32.mrf.mxu0
  %v873 = vadd.f32 0.0, %v872
  %874 = vmatmul.f32.gmra.mxu0 %v338
  %v875 = vpop.f32.mrf.mxu0
  %v876 = vadd.f32 0.0, %v875
  %877 = vmatmul.f32.gmra.mxu0 %v341
  %v878 = vpop.f32.mrf.mxu0
  %v879 = vadd.f32 0.0, %v878
  %880 = vmatmul.f32.gmra.mxu0 %v344
  %v881 = vpop.f32.mrf.mxu0
  %v882 = vadd.f32 0.0, %v881
  %883 = vmatmul.f32.gmra.mxu0 %v347
  %v884 = vpop.f32.mrf.mxu0
  %v885 = vadd.f32 0.0, %v884
  %886 = vmatmul.f32.gmra.mxu0 %v350
  %v887 = vpop.f32.mrf.mxu0
  %v888 = vadd.f32 0.0, %v887
  %889 = vmatmul.f32.gmra.mxu0 %v353
  %v890 = vpop.f32.mrf.mxu0
  %v891 = vadd.f32 0.0, %v890
  %892 = vmatmul.f32.gmra.mxu0 %v356
  %v893 = vpop.f32.mrf.mxu0
  %v894 = vadd.f32 0.0, %v893
  %895 = vmatmul.f32.gmra.mxu0 %v359
  %v896 = vpop.f32.mrf.mxu0
  %v897 = vadd.f32 0.0, %v896
  %898 = vmatmul.f32.gmra.mxu0 %v362
  %v899 = vpop.f32.mrf.mxu0
  %v900 = vadd.f32 0.0, %v899
  %901 = vmatmul.f32.gmra.mxu0 %v365
  %v902 = vpop.f32.mrf.mxu0
  %v903 = vadd.f32 0.0, %v902
  %904 = vmatmul.f32.gmra.mxu0 %v368
  %v905 = vpop.f32.mrf.mxu0
  %v906 = vadd.f32 0.0, %v905
  %907 = vmatmul.f32.gmra.mxu0 %v371
  %v908 = vpop.f32.mrf.mxu0
  %v909 = vadd.f32 0.0, %v908
  %910 = vmatmul.f32.gmra.mxu0 %v374
  %v911 = vpop.f32.mrf.mxu0
  %v912 = vadd.f32 0.0, %v911
  %913 = vdwg.mxu0
  %914 = vst [vmem:[%s2] sm:$0xff] %v394
  %vm915 = vcmask 556032
  %916 = vst.msk [vmem:[%s2 + $0x8] sm:$0xff] %vm915, %v663
  %917 = vst [vmem:[%s2 + $0x10] sm:$0xff] %v397
  %918 = vst.msk [vmem:[%s2 + $0x18] sm:$0xff] %vm915, %v666
  %919 = vst [vmem:[%s2 + $0x20] sm:$0xff] %v400
  %920 = vst.msk [vmem:[%s2 + $0x28] sm:$0xff] %vm915, %v669
  %921 = vst [vmem:[%s2 + $0x30] sm:$0xff] %v403
  %922 = vst.msk [vmem:[%s2 + $0x38] sm:$0xff] %vm915, %v672
  %923 = vst [vmem:[%s2 + $0x40] sm:$0xff] %v406
  %924 = vst.msk [vmem:[%s2 + $0x48] sm:$0xff] %vm915, %v675
  %925 = vst [vmem:[%s2 + $0x50] sm:$0xff] %v409
  %926 = vst.msk [vmem:[%s2 + $0x58] sm:$0xff] %vm915, %v678
  %927 = vst [vmem:[%s2 + $0x60] sm:$0xff] %v412
  %928 = vst.msk [vmem:[%s2 + $0x68] sm:$0xff] %vm915, %v681
  %929 = vst [vmem:[%s2 + $0x70] sm:$0xff] %v415
  %930 = vst.msk [vmem:[%s2 + $0x78] sm:$0xff] %vm915, %v684
  %931 = vst [vmem:[%s2 + $0x80] sm:$0xff] %v418
  %932 = vst.msk [vmem:[%s2 + $0x88] sm:$0xff] %vm915, %v687
  %933 = vst [vmem:[%s2 + $0x90] sm:$0xff] %v421
  %934 = vst.msk [vmem:[%s2 + $0x98] sm:$0xff] %vm915, %v690
  %935 = vst [vmem:[%s2 + $0xa0] sm:$0xff] %v424
  %936 = vst.msk [vmem:[%s2 + $0xa8] sm:$0xff] %vm915, %v693
  %937 = vst [vmem:[%s2 + $0xb0] sm:$0xff] %v427
  %938 = vst.msk [vmem:[%s2 + $0xb8] sm:$0xff] %vm915, %v696
  %939 = vst [vmem:[%s2 + $0xc0] sm:$0xff] %v430
  %940 = vst.msk [vmem:[%s2 + $0xc8] sm:$0xff] %vm915, %v699
  %941 = vst [vmem:[%s2 + $0xd0] sm:$0xff] %v433
  %942 = vst.msk [vmem:[%s2 + $0xd8] sm:$0xff] %vm915, %v702
  %943 = vst [vmem:[%s2 + $0xe0] sm:$0xff] %v436
  %944 = vst.msk [vmem:[%s2 + $0xe8] sm:$0xff] %vm915, %v705
  %945 = vst [vmem:[%s2 + $0xf0] sm:$0xff] %v439
  %946 = vst.msk [vmem:[%s2 + $0xf8] sm:$0xff] %vm915, %v708
  %947 = vst [vmem:[%s2 + $0x100] sm:$0xff] %v442
  %948 = vst.msk [vmem:[%s2 + $0x108] sm:$0xff] %vm915, %v711
  %949 = vst [vmem:[%s2 + $0x110] sm:$0xff] %v445
  %950 = vst.msk [vmem:[%s2 + $0x118] sm:$0xff] %vm915, %v714
  %951 = vst [vmem:[%s2 + $0x120] sm:$0xff] %v448
  %952 = vst.msk [vmem:[%s2 + $0x128] sm:$0xff] %vm915, %v717
  %953 = vst [vmem:[%s2 + $0x130] sm:$0xff] %v451
  %954 = vst.msk [vmem:[%s2 + $0x138] sm:$0xff] %vm915, %v720
  %955 = vst [vmem:[%s2 + $0x140] sm:$0xff] %v454
  %956 = vst.msk [vmem:[%s2 + $0x148] sm:$0xff] %vm915, %v723
  %957 = vst [vmem:[%s2 + $0x150] sm:$0xff] %v457
  %958 = vst.msk [vmem:[%s2 + $0x158] sm:$0xff] %vm915, %v726
  %959 = vst [vmem:[%s2 + $0x160] sm:$0xff] %v460
  %960 = vst.msk [vmem:[%s2 + $0x168] sm:$0xff] %vm915, %v729
  %961 = vst [vmem:[%s2 + $0x170] sm:$0xff] %v463
  %962 = vst.msk [vmem:[%s2 + $0x178] sm:$0xff] %vm915, %v732
  %963 = vst [vmem:[%s2 + $0x180] sm:$0xff] %v466
  %964 = vst.msk [vmem:[%s2 + $0x188] sm:$0xff] %vm915, %v735
  %965 = vst [vmem:[%s2 + $0x190] sm:$0xff] %v469
  %966 = vst.msk [vmem:[%s2 + $0x198] sm:$0xff] %vm915, %v738
  %967 = vst [vmem:[%s2 + $0x1a0] sm:$0xff] %v472
  %968 = vst.msk [vmem:[%s2 + $0x1a8] sm:$0xff] %vm915, %v741
  %969 = vst [vmem:[%s2 + $0x1b0] sm:$0xff] %v475
  %970 = vst.msk [vmem:[%s2 + $0x1b8] sm:$0xff] %vm915, %v744
  %971 = vst [vmem:[%s2 + $0x1c0] sm:$0xff] %v478
  %972 = vst.msk [vmem:[%s2 + $0x1c8] sm:$0xff] %vm915, %v747
  %973 = vst [vmem:[%s2 + $0x1d0] sm:$0xff] %v481
  %974 = vst.msk [vmem:[%s2 + $0x1d8] sm:$0xff] %vm915, %v750
  %975 = vst [vmem:[%s2 + $0x1e0] sm:$0xff] %v484
  %976 = vst.msk [vmem:[%s2 + $0x1e8] sm:$0xff] %vm915, %v753
  %977 = vst [vmem:[%s2 + $0x1f0] sm:$0xff] %v487
  %978 = vst.msk [vmem:[%s2 + $0x1f8] sm:$0xff] %vm915, %v756
  %979 = vst [vmem:[%s2 + $0x200] sm:$0xff] %v490
  %980 = vst.msk [vmem:[%s2 + $0x208] sm:$0xff] %vm915, %v759
  %981 = vst [vmem:[%s2 + $0x210] sm:$0xff] %v493
  %982 = vst.msk [vmem:[%s2 + $0x218] sm:$0xff] %vm915, %v762
  %983 = vst [vmem:[%s2 + $0x220] sm:$0xff] %v496
  %984 = vst.msk [vmem:[%s2 + $0x228] sm:$0xff] %vm915, %v765
  %985 = vst [vmem:[%s2 + $0x230] sm:$0xff] %v499
  %986 = vst.msk [vmem:[%s2 + $0x238] sm:$0xff] %vm915, %v768
  %987 = vst [vmem:[%s2 + $0x240] sm:$0xff] %v502
  %988 = vst.msk [vmem:[%s2 + $0x248] sm:$0xff] %vm915, %v771
  %989 = vst [vmem:[%s2 + $0x250] sm:$0xff] %v505
  %990 = vst.msk [vmem:[%s2 + $0x258] sm:$0xff] %vm915, %v774
  %991 = vst [vmem:[%s2 + $0x260] sm:$0xff] %v508
  %992 = vst.msk [vmem:[%s2 + $0x268] sm:$0xff] %vm915, %v777
  %993 = vst [vmem:[%s2 + $0x270] sm:$0xff] %v511
  %994 = vst.msk [vmem:[%s2 + $0x278] sm:$0xff] %vm915, %v780
  %995 = vst [vmem:[%s2 + $0x280] sm:$0xff] %v514
  %996 = vst.msk [vmem:[%s2 + $0x288] sm:$0xff] %vm915, %v783
  %997 = vst [vmem:[%s2 + $0x290] sm:$0xff] %v517
  %998 = vst.msk [vmem:[%s2 + $0x298] sm:$0xff] %vm915, %v786
  %999 = vst [vmem:[%s2 + $0x2a0] sm:$0xff] %v520
  %1000 = vst.msk [vmem:[%s2 + $0x2a8] sm:$0xff] %vm915, %v789
  %1001 = vst [vmem:[%s2 + $0x2b0] sm:$0xff] %v523
  %1002 = vst.msk [vmem:[%s2 + $0x2b8] sm:$0xff] %vm915, %v792
  %1003 = vst [vmem:[%s2 + $0x2c0] sm:$0xff] %v526
  %1004 = vst.msk [vmem:[%s2 + $0x2c8] sm:$0xff] %vm915, %v795
  %1005 = vst [vmem:[%s2 + $0x2d0] sm:$0xff] %v529
  %1006 = vst.msk [vmem:[%s2 + $0x2d8] sm:$0xff] %vm915, %v798
  %1007 = vst [vmem:[%s2 + $0x2e0] sm:$0xff] %v532
  %1008 = vst.msk [vmem:[%s2 + $0x2e8] sm:$0xff] %vm915, %v801
  %1009 = vst [vmem:[%s2 + $0x2f0] sm:$0xff] %v535
  %1010 = vst.msk [vmem:[%s2 + $0x2f8] sm:$0xff] %vm915, %v804
  %1011 = vst [vmem:[%s2 + $0x300] sm:$0xff] %v538
  %1012 = vst.msk [vmem:[%s2 + $0x308] sm:$0xff] %vm915, %v807
  %1013 = vst [vmem:[%s2 + $0x310] sm:$0xff] %v541
  %1014 = vst.msk [vmem:[%s2 + $0x318] sm:$0xff] %vm915, %v810
  %1015 = vst [vmem:[%s2 + $0x320] sm:$0xff] %v544
  %1016 = vst.msk [vmem:[%s2 + $0x328] sm:$0xff] %vm915, %v813
  %1017 = vst [vmem:[%s2 + $0x330] sm:$0xff] %v547
  %1018 = vst.msk [vmem:[%s2 + $0x338] sm:$0xff] %vm915, %v816
  %1019 = vst [vmem:[%s2 + $0x340] sm:$0xff] %v550
  %1020 = vst.msk [vmem:[%s2 + $0x348] sm:$0xff] %vm915, %v819
  %1021 = vst [vmem:[%s2 + $0x350] sm:$0xff] %v553
  %1022 = vst.msk [vmem:[%s2 + $0x358] sm:$0xff] %vm915, %v822
  %1023 = vst [vmem:[%s2 + $0x360] sm:$0xff] %v556
  %1024 = vst.msk [vmem:[%s2 + $0x368] sm:$0xff] %vm915, %v825
  %1025 = vst [vmem:[%s2 + $0x370] sm:$0xff] %v559
  %1026 = vst.msk [vmem:[%s2 + $0x378] sm:$0xff] %vm915, %v828
  %1027 = vst [vmem:[%s2 + $0x380] sm:$0xff] %v562
  %1028 = vst.msk [vmem:[%s2 + $0x388] sm:$0xff] %vm915, %v831
  %1029 = vst [vmem:[%s2 + $0x390] sm:$0xff] %v565
  %1030 = vst.msk [vmem:[%s2 + $0x398] sm:$0xff] %vm915, %v834
  %1031 = vst [vmem:[%s2 + $0x3a0] sm:$0xff] %v568
  %1032 = vst.msk [vmem:[%s2 + $0x3a8] sm:$0xff] %vm915, %v837
  %1033 = vst [vmem:[%s2 + $0x3b0] sm:$0xff] %v571
  %1034 = vst.msk [vmem:[%s2 + $0x3b8] sm:$0xff] %vm915, %v840
  %1035 = vst [vmem:[%s2 + $0x3c0] sm:$0xff] %v574
  %1036 = vst.msk [vmem:[%s2 + $0x3c8] sm:$0xff] %vm915, %v843
  %1037 = vst [vmem:[%s2 + $0x3d0] sm:$0xff] %v577
  %1038 = vst.msk [vmem:[%s2 + $0x3d8] sm:$0xff] %vm915, %v846
  %1039 = vst [vmem:[%s2 + $0x3e0] sm:$0xff] %v580
  %1040 = vst.msk [vmem:[%s2 + $0x3e8] sm:$0xff] %vm915, %v849
  %1041 = vst [vmem:[%s2 + $0x3f0] sm:$0xff] %v583
  %1042 = vst.msk [vmem:[%s2 + $0x3f8] sm:$0xff] %vm915, %v852
  %1043 = vst [vmem:[%s2 + $0x400] sm:$0xff] %v586
  %1044 = vst.msk [vmem:[%s2 + $0x408] sm:$0xff] %vm915, %v855
  %1045 = vst [vmem:[%s2 + $0x410] sm:$0xff] %v589
  %1046 = vst.msk [vmem:[%s2 + $0x418] sm:$0xff] %vm915, %v858
  %1047 = vst [vmem:[%s2 + $0x420] sm:$0xff] %v592
  %1048 = vst.msk [vmem:[%s2 + $0x428] sm:$0xff] %vm915, %v861
  %1049 = vst [vmem:[%s2 + $0x430] sm:$0xff] %v595
  %1050 = vst.msk [vmem:[%s2 + $0x438] sm:$0xff] %vm915, %v864
  %1051 = vst [vmem:[%s2 + $0x440] sm:$0xff] %v598
  %1052 = vst.msk [vmem:[%s2 + $0x448] sm:$0xff] %vm915, %v867
  %1053 = vst [vmem:[%s2 + $0x450] sm:$0xff] %v601
  %1054 = vst.msk [vmem:[%s2 + $0x458] sm:$0xff] %vm915, %v870
  %1055 = vst [vmem:[%s2 + $0x460] sm:$0xff] %v604
  %1056 = vst.msk [vmem:[%s2 + $0x468] sm:$0xff] %vm915, %v873
  %1057 = vst [vmem:[%s2 + $0x470] sm:$0xff] %v607
  %1058 = vst.msk [vmem:[%s2 + $0x478] sm:$0xff] %vm915, %v876
  %1059 = vst [vmem:[%s2 + $0x480] sm:$0xff] %v610
  %1060 = vst.msk [vmem:[%s2 + $0x488] sm:$0xff] %vm915, %v879
  %1061 = vst [vmem:[%s2 + $0x490] sm:$0xff] %v613
  %1062 = vst.msk [vmem:[%s2 + $0x498] sm:$0xff] %vm915, %v882
  %1063 = vst [vmem:[%s2 + $0x4a0] sm:$0xff] %v616
  %1064 = vst.msk [vmem:[%s2 + $0x4a8] sm:$0xff] %vm915, %v885
  %1065 = vst [vmem:[%s2 + $0x4b0] sm:$0xff] %v619
  %1066 = vst.msk [vmem:[%s2 + $0x4b8] sm:$0xff] %vm915, %v888
  %1067 = vst [vmem:[%s2 + $0x4c0] sm:$0xff] %v622
  %1068 = vst.msk [vmem:[%s2 + $0x4c8] sm:$0xff] %vm915, %v891
  %1069 = vst [vmem:[%s2 + $0x4d0] sm:$0xff] %v625
  %1070 = vst.msk [vmem:[%s2 + $0x4d8] sm:$0xff] %vm915, %v894
  %1071 = vst [vmem:[%s2 + $0x4e0] sm:$0xff] %v628
  %1072 = vst.msk [vmem:[%s2 + $0x4e8] sm:$0xff] %vm915, %v897
  %1073 = vst [vmem:[%s2 + $0x4f0] sm:$0xff] %v631
  %1074 = vst.msk [vmem:[%s2 + $0x4f8] sm:$0xff] %vm915, %v900
  %1075 = vst [vmem:[%s2 + $0x500] sm:$0xff] %v634
  %1076 = vst.msk [vmem:[%s2 + $0x508] sm:$0xff] %vm915, %v903
  %1077 = vst [vmem:[%s2 + $0x510] sm:$0xff] %v637
  %1078 = vst.msk [vmem:[%s2 + $0x518] sm:$0xff] %vm915, %v906
  %1079 = vst [vmem:[%s2 + $0x520] sm:$0xff] %v640
  %1080 = vst.msk [vmem:[%s2 + $0x528] sm:$0xff] %vm915, %v909
  %1081 = vst [vmem:[%s2 + $0x530] sm:$0xff] %v643
  %1082 = vst.msk [vmem:[%s2 + $0x538] sm:$0xff] %vm915, %v912
  // Predicated region
  $region10: #{conv2d_1x1_nchw.1} parent=0 // pred_check
    _
  $region11: #{conv2d_1x1_nchw.1} parent=0 // pred_check_branch
    %1084 = sbr.rel (0) target = $region13
  $region12: #{conv2d_1x1_nchw.1} parent=0 // pred_region
    _
  $region13: #{conv2d_1x1_nchw.1} parent=0 // pred_fallthru
    _
  // Predicated region
  $region14: #{conv2d_1x1_nchw.1} parent=0 // pred_check
    _
  $region15: #{conv2d_1x1_nchw.1} parent=0 // pred_check_branch
    %1086 = sbr.rel (0) target = $region17
  $region16: #{conv2d_1x1_nchw.1} parent=0 // pred_region
    _
  $region17: #{conv2d_1x1_nchw.1} parent=0 // pred_fallthru
    _

</llo_original>
